<compile_context>
chip_gen: v6e
topology: v6e:2x2x1
jax: 0.10.0
libtpu: 0.0.40
codegen_flags: <defaults>
</compile_context>

<pallas_src>
import jax
import jax.numpy as jnp
import numpy as np
from jax.experimental import pallas as pl
from jax.experimental.pallas import tpu as pltpu

# ----------------------------- problem sizes -----------------------------
BATCH = 2
IN_CHANNELS = 4
FRAMES = 8
NODES = 16
N_HEADS = 2
HIDDEN_DIM = 16                      # module arg; per-head dim = HIDDEN_DIM // N_HEADS
HD = HIDDEN_DIM // N_HEADS           # per-head hidden dim
LRELU_SLOPE = 0.01                   # nn.LeakyReLU() default
GRID_STEPS = 2                       # 2 parallel blocks -> both TensorCores on v7x


def _leaky(v):
    return jnp.where(v >= 0, v, LRELU_SLOPE * v)


# ------------------------------- kernel ----------------------------------
def gat_block_kernel(x_ref, w1_ref, b1_ref, wsel_ref, b2_ref,
                     maskT_ref, maskd_ref, patt_ref, blk1_ref, out_ref):
    """One grid step processes L = B*F*N / GRID_STEPS node-columns (lanes).

    x_ref    : (C, L)              input features, transposed (channels on sublanes)
    w1_ref   : (HEADS*HD, C)       linear1 weight (PyTorch layout)
    b1_ref   : (HEADS*HD, 1)       linear1 bias (column)
    wsel_ref : (2*HEADS, HEADS*HD) block-diag score projection
                                   rows = [src_h0..src_hH, dst_h0..dst_hH]
    b2_ref   : (1, 1)              linear2 bias
    maskT_ref: (N, L)              maskT[j, bf*N + i] = mask[i, j]
    maskd_ref: (1, L)              maskd[0, bf*N + i] = mask[i, i]
    patt_ref : (N, L)              tiled identity:  patt[j, r] = (r % N == j)
    blk1_ref : (L, L)              block-diag ones: blk1[r, c] = (r//N == c//N)
    out_ref  : (HEADS*HD, L)       output features, transposed
    """
    xT = x_ref[...]
    b2 = b2_ref[0, 0]
    maskT = maskT_ref[...]
    maskd = maskd_ref[...]
    patt = patt_ref[...]
    blk1 = blk1_ref[...]

    # linear1 batched over every (b, f, n) column in this block: one MXU pass.
    hT = jnp.dot(w1_ref[...], xT, preferred_element_type=jnp.float32) + b1_ref[...]
    # fused src/dst score projections for all heads: one MXU pass -> [2*HEADS, L]
    sT = jnp.dot(wsel_ref[...], hT, preferred_element_type=jnp.float32)

    # Per head: score matrix is [N (j on sublanes), L ((bf, i) on lanes)].
    # Every tensor below is full 128-lane width.
    for h in range(N_HEADS):
        src = sT[h:h + 1, :]                          # [1, L]  s_src[bf, h, i]
        dst = sT[N_HEADS + h:N_HEADS + h + 1, :]      # [1, L]  s_dst[bf, h, i]

        # M[j, bf*N + i] = s_dst[bf, h, j]   (block transpose+broadcast via MXU;
        # exactly one nonzero term per dot product, so the result is exact).
        M = jnp.dot(patt * dst, blk1, preferred_element_type=jnp.float32)  # [N, L]

        score = _leaky(src + M + b2) * maskT          # [N, L]
        m = jnp.max(score, axis=0, keepdims=True)     # [1, L] row max over j
        e = jnp.exp(score - m)                        # [N, L]
        denom = jnp.sum(e, axis=0, keepdims=True)     # [1, L] row sum over j

        # Diagonal attention coefficient from vectors (no extra NxN work).
        diag = _leaky(src + dst + b2) * maskd         # [1, L]
        # approx=True (EUP vrcp) would miss the 1e-5 tolerance -> keep exact.
        alpha = jnp.exp(diag - m) * pl.reciprocal(denom, approx=False)

        # lane-dense [HD, 128] store (full-width vst, vreg-row aligned rows).
        out_ref[h * HD:(h + 1) * HD, :] = alpha * hT[h * HD:(h + 1) * HD, :]


# ------------------------------- wrapper ----------------------------------
@jax.jit
def gat_block_pallas(x, mask, w1, b1, w2, b2):
    """x: [B, C, F, N] f32, mask: [N, N] f32 -> [B, HEADS*HD, F, N] f32."""
    B, C, Fr, Nn = x.shape
    R = B * Fr * Nn                       # total node-columns (256)
    assert R % GRID_STEPS == 0
    L = R // GRID_STEPS                   # columns per grid step (128)
    assert L % Nn == 0
    reps = L // Nn                        # (b, f) slices per grid step (8)

    # transposed, lane-major input: column index = (b*F + f)*N + n
    xT = jnp.transpose(x, (1, 0, 2, 3)).reshape(C, R)                  # [C, R]

    # block-diagonal score-projection weight: rows = [src per head, dst per head]
    w_src = w2[0, :HD]
    w_dst = w2[0, HD:]
    eye_h = jnp.eye(N_HEADS, dtype=jnp.float32)
    wsel = jnp.concatenate([jnp.kron(eye_h, w_src[None, :]),
                            jnp.kron(eye_h, w_dst[None, :])], axis=0)  # [2H, H*HD]

    b1_col = b1.reshape(N_HEADS * HD, 1)
    b2_2d = b2.reshape(1, 1)

    # lane-tiled constants (same for every grid step)
    maskT_t = jnp.tile(mask.T, (1, reps))                              # [N, L]
    maskd_t = jnp.tile(jnp.diag(mask).reshape(1, Nn), (1, reps))       # [1, L]
    patt = jnp.tile(jnp.eye(Nn, dtype=jnp.float32), (1, reps))         # [N, L]
    lane_blk = jnp.arange(L) // Nn
    blk1 = (lane_blk[:, None] == lane_blk[None, :]).astype(jnp.float32)  # [L, L]

    outT = pl.pallas_call(
        gat_block_kernel,
        out_shape=jax.ShapeDtypeStruct((N_HEADS * HD, R), jnp.float32),
        grid_spec=pltpu.PrefetchScalarGridSpec(
            num_scalar_prefetch=0,
            grid=(GRID_STEPS,),
            in_specs=[
                pl.BlockSpec((C, L), lambda i: (0, i)),                    # xT
                pl.BlockSpec((N_HEADS * HD, C), lambda i: (0, 0)),         # w1
                pl.BlockSpec((N_HEADS * HD, 1), lambda i: (0, 0)),         # b1
                pl.BlockSpec((2 * N_HEADS, N_HEADS * HD), lambda i: (0, 0)),  # wsel
                pl.BlockSpec((1, 1), lambda i: (0, 0)),                    # b2
                pl.BlockSpec((Nn, L), lambda i: (0, 0)),                   # maskT
                pl.BlockSpec((1, L), lambda i: (0, 0)),                    # mask diag
                pl.BlockSpec((Nn, L), lambda i: (0, 0)),                   # tiled eye
                pl.BlockSpec((L, L), lambda i: (0, 0)),                    # block ones
            ],
            out_specs=pl.BlockSpec((N_HEADS * HD, L), lambda i: (0, i)),
        ),
        compiler_params=pltpu.CompilerParams(
            dimension_semantics=("parallel",)),
    )(xT, w1, b1_col, wsel, b2_2d, maskT_t, maskd_t, patt, blk1)

    # [HEADS*HD, B*F*N] -> [HEADS*HD, B, F, N] -> [B, HEADS*HD, F, N]
    out = outT.reshape(N_HEADS * HD, B, Fr, Nn)
    return jnp.transpose(out, (1, 0, 2, 3))


# --------------------------- pure-JAX reference ----------------------------
def gat_block_ref(x, mask, w1, b1, w2, b2):
    B, C, Fr, Nn = x.shape
    xp = jnp.transpose(x, (0, 2, 3, 1))                                  # [B,F,N,C]
    h = xp @ jnp.transpose(w1) + b1                                      # [B,F,N,H*HD]
    h = h.reshape(B, Fr, Nn, N_HEADS, HD)
    h = jnp.transpose(h, (0, 3, 1, 2, 4))                                # [B,H,F,N,HD]
    x1 = jnp.repeat(h[..., :, None, :], Nn, axis=-2)                     # [B,H,F,N,N,HD]
    x2 = jnp.repeat(h[..., None, :, :], Nn, axis=-3)                     # [B,H,F,N,N,HD]
    x3 = jnp.concatenate([x1, x2], axis=-1)                              # [...,2*HD]
    s = x3 @ jnp.transpose(w2) + b2                                      # [...,1]
    s = jnp.where(s >= 0, s, LRELU_SLOPE * s)[..., 0]                    # [B,H,F,N,N]
    s = s * mask
    p = jax.nn.softmax(s, axis=-1)
    out = jnp.einsum('bhfnn,bhfnj->bhfnj', p, h)                         # diag-scale
    out = jnp.transpose(out, (0, 2, 3, 1, 4)).reshape(B, Fr, Nn, N_HEADS * HD)
    return jnp.transpose(out, (0, 3, 1, 2))


# --------------------------------- main ------------------------------------
if __name__ == "__main__":
    key = jax.random.PRNGKey(0)
    k_x, k_m, k_w1, k_b1, k_w2, k_b2 = jax.random.split(key, 6)

    x = jax.random.normal(k_x, (BATCH, IN_CHANNELS, FRAMES, NODES), dtype=jnp.float32)
    # adjacency mask: deterministic 0/1 matrix (float), with self-loops
    mask = (jax.random.uniform(k_m, (NODES, NODES)) > 0.5).astype(jnp.float32)
    mask = jnp.maximum(mask, jnp.eye(NODES, dtype=jnp.float32))

    # deterministic parameter init (shapes per nn.Linear in __init__)
    w1 = 0.1 * jax.random.normal(k_w1, (N_HEADS * HD, IN_CHANNELS), dtype=jnp.float32)
    b1 = 0.1 * jax.random.normal(k_b1, (N_HEADS * HD,), dtype=jnp.float32)
    w2 = 0.1 * jax.random.normal(k_w2, (1, 2 * HD), dtype=jnp.float32)
    b2 = 0.1 * jax.random.normal(k_b2, (1,), dtype=jnp.float32)

    out = gat_block_pallas(x, mask, w1, b1, w2, b2)
    out = jax.block_until_ready(out)

    ref = gat_block_ref(x, mask, w1, b1, w2, b2)
    ref = jax.block_until_ready(ref)

    assert out.shape == (BATCH, N_HEADS * HD, FRAMES, NODES), out.shape
    np.testing.assert_allclose(np.asarray(out), np.asarray(ref), rtol=1e-5, atol=1e-5)

    print("KERNEL_OK")
</pallas_src>

<mosaic_0001>
module attributes {stable_mosaic.version = 11 : i64} {
  func.func @gat_block_kernel(%arg0: i32, %arg1: memref<4x128xf32, #tpu.memory_space<vmem>>, %arg2: memref<16x4xf32, #tpu.memory_space<vmem>>, %arg3: memref<16x1xf32, #tpu.memory_space<vmem>>, %arg4: memref<4x16xf32, #tpu.memory_space<vmem>>, %arg5: memref<1x1xf32, #tpu.memory_space<vmem>>, %arg6: memref<16x128xf32, #tpu.memory_space<vmem>>, %arg7: memref<1x128xf32, #tpu.memory_space<vmem>>, %arg8: memref<16x128xf32, #tpu.memory_space<vmem>>, %arg9: memref<128x128xf32, #tpu.memory_space<vmem>>, %arg10: memref<16x128xf32, #tpu.memory_space<vmem>>) attributes {dimension_semantics = [#tpu.dimension_semantics<parallel>], iteration_bounds = array<i64: 2>, scalar_prefetch = 0 : i64, scratch_operands = 0 : i64, tpu.core_type = #tpu.core_type<tc>, window_params = [{transform_indices = @transform_0, window_bounds = array<i64: 4, 128>}, {pipeline_mode = #tpu.pipeline_mode<synchronous>, transform_indices = @transform_1, window_bounds = array<i64: 16, 4>}, {pipeline_mode = #tpu.pipeline_mode<synchronous>, transform_indices = @transform_2, window_bounds = array<i64: 16, 1>}, {pipeline_mode = #tpu.pipeline_mode<synchronous>, transform_indices = @transform_3, window_bounds = array<i64: 4, 16>}, {pipeline_mode = #tpu.pipeline_mode<synchronous>, transform_indices = @transform_4, window_bounds = array<i64: 1, 1>}, {pipeline_mode = #tpu.pipeline_mode<synchronous>, transform_indices = @transform_5, window_bounds = array<i64: 16, 128>}, {pipeline_mode = #tpu.pipeline_mode<synchronous>, transform_indices = @transform_6, window_bounds = array<i64: 1, 128>}, {pipeline_mode = #tpu.pipeline_mode<synchronous>, transform_indices = @transform_7, window_bounds = array<i64: 16, 128>}, {pipeline_mode = #tpu.pipeline_mode<synchronous>, transform_indices = @transform_8, window_bounds = array<i64: 128, 128>}, {transform_indices = @transform_9, window_bounds = array<i64: 16, 128>}]} {
    %c0 = arith.constant 0 : index
    %c0_0 = arith.constant 0 : index
    %0 = vector.load %arg1[%c0, %c0_0] : memref<4x128xf32, #tpu.memory_space<vmem>>, vector<4x128xf32>
    %c0_1 = arith.constant 0 : index
    %c0_2 = arith.constant 0 : index
    %1 = vector.load %arg5[%c0_1, %c0_2] : memref<1x1xf32, #tpu.memory_space<vmem>>, vector<1x1xf32>
    %2 = vector.extract %1[0, 0] : f32 from vector<1x1xf32>
    %c0_3 = arith.constant 0 : index
    %c0_4 = arith.constant 0 : index
    %3 = vector.load %arg6[%c0_3, %c0_4] : memref<16x128xf32, #tpu.memory_space<vmem>>, vector<16x128xf32>
    %c0_5 = arith.constant 0 : index
    %c0_6 = arith.constant 0 : index
    %4 = vector.load %arg7[%c0_5, %c0_6] : memref<1x128xf32, #tpu.memory_space<vmem>>, vector<1x128xf32>
    %c0_7 = arith.constant 0 : index
    %c0_8 = arith.constant 0 : index
    %5 = vector.load %arg8[%c0_7, %c0_8] : memref<16x128xf32, #tpu.memory_space<vmem>>, vector<16x128xf32>
    %c0_9 = arith.constant 0 : index
    %c0_10 = arith.constant 0 : index
    %6 = vector.load %arg9[%c0_9, %c0_10] : memref<128x128xf32, #tpu.memory_space<vmem>>, vector<128x128xf32>
    %c0_11 = arith.constant 0 : index
    %c0_12 = arith.constant 0 : index
    %7 = vector.load %arg2[%c0_11, %c0_12] : memref<16x4xf32, #tpu.memory_space<vmem>>, vector<16x4xf32>
    %cst = arith.constant dense<0.000000e+00> : vector<16x128xf32>
    %8 = tpu.matmul %7, %0, %cst {dimension_numbers = #tpu.dot_dimension_numbers<[1], [0], [0], [1], [0, 0, 1, 1], [], []>} : vector<16x4xf32>, vector<4x128xf32>, vector<16x128xf32> -> vector<16x128xf32>
    %c0_13 = arith.constant 0 : index
    %c0_14 = arith.constant 0 : index
    %9 = vector.load %arg3[%c0_13, %c0_14] : memref<16x1xf32, #tpu.memory_space<vmem>>, vector<16x1xf32>
    %10 = vector.broadcast %9 : vector<16x1xf32> to vector<16x128xf32>
    %11 = arith.addf %8, %10 : vector<16x128xf32>
    %c0_15 = arith.constant 0 : index
    %c0_16 = arith.constant 0 : index
    %12 = vector.load %arg4[%c0_15, %c0_16] : memref<4x16xf32, #tpu.memory_space<vmem>>, vector<4x16xf32>
    %cst_17 = arith.constant dense<0.000000e+00> : vector<4x128xf32>
    %13 = tpu.matmul %12, %11, %cst_17 {dimension_numbers = #tpu.dot_dimension_numbers<[1], [0], [0], [1], [0, 0, 1, 1], [], []>} : vector<4x16xf32>, vector<16x128xf32>, vector<4x128xf32> -> vector<4x128xf32>
    %14 = vector.extract_strided_slice %13 {offsets = [0, 0], sizes = [1, 128], strides = [1, 1]} : vector<4x128xf32> to vector<1x128xf32>
    %15 = vector.extract_strided_slice %13 {offsets = [2, 0], sizes = [1, 128], strides = [1, 1]} : vector<4x128xf32> to vector<1x128xf32>
    %16 = vector.broadcast %15 : vector<1x128xf32> to vector<16x128xf32>
    %17 = arith.mulf %5, %16 : vector<16x128xf32>
    %cst_18 = arith.constant dense<0.000000e+00> : vector<16x128xf32>
    %18 = tpu.matmul %17, %6, %cst_18 {dimension_numbers = #tpu.dot_dimension_numbers<[1], [0], [0], [1], [0, 0, 1, 1], [], []>} : vector<16x128xf32>, vector<128x128xf32>, vector<16x128xf32> -> vector<16x128xf32>
    %19 = vector.broadcast %14 : vector<1x128xf32> to vector<16x128xf32>
    %20 = arith.addf %19, %18 : vector<16x128xf32>
    %21 = vector.broadcast %2 : f32 to vector<16x128xf32>
    %22 = arith.addf %20, %21 : vector<16x128xf32>
    %cst_19 = arith.constant 0.000000e+00 : f32
    %23 = vector.broadcast %cst_19 : f32 to vector<16x128xf32>
    %24 = arith.cmpf oge, %22, %23 : vector<16x128xf32>
    %cst_20 = arith.constant 0.00999999977 : f32
    %25 = vector.broadcast %cst_20 : f32 to vector<16x128xf32>
    %26 = arith.mulf %25, %22 : vector<16x128xf32>
    %27 = arith.select %24, %22, %26 : vector<16x128xi1>, vector<16x128xf32>
    %28 = arith.mulf %27, %3 : vector<16x128xf32>
    %cst_21 = arith.constant dense<0xFF800000> : vector<128xf32>
    %29 = vector.multi_reduction <maximumf>, %28, %cst_21 [0] : vector<16x128xf32> to vector<128xf32>
    %30 = vector.shape_cast %29 : vector<128xf32> to vector<1x128xf32>
    %31 = vector.broadcast %30 : vector<1x128xf32> to vector<16x128xf32>
    %32 = arith.subf %28, %31 : vector<16x128xf32>
    %33 = math.exp %32 : vector<16x128xf32>
    %cst_22 = arith.constant dense<0.000000e+00> : vector<128xf32>
    %34 = vector.multi_reduction <add>, %33, %cst_22 [0] : vector<16x128xf32> to vector<128xf32>
    %35 = vector.shape_cast %34 : vector<128xf32> to vector<1x128xf32>
    %36 = arith.addf %14, %15 : vector<1x128xf32>
    %37 = vector.broadcast %2 : f32 to vector<1x128xf32>
    %38 = arith.addf %36, %37 : vector<1x128xf32>
    %cst_23 = arith.constant 0.000000e+00 : f32
    %39 = vector.broadcast %cst_23 : f32 to vector<1x128xf32>
    %40 = arith.cmpf oge, %38, %39 : vector<1x128xf32>
    %cst_24 = arith.constant 0.00999999977 : f32
    %41 = vector.broadcast %cst_24 : f32 to vector<1x128xf32>
    %42 = arith.mulf %41, %38 : vector<1x128xf32>
    %43 = arith.select %40, %38, %42 : vector<1x128xi1>, vector<1x128xf32>
    %44 = arith.mulf %43, %4 : vector<1x128xf32>
    %45 = arith.subf %44, %30 : vector<1x128xf32>
    %46 = math.exp %45 : vector<1x128xf32>
    %47 = tpu.reciprocal %35 : vector<1x128xf32> -> vector<1x128xf32>
    %48 = arith.mulf %46, %47 : vector<1x128xf32>
    %49 = vector.extract_strided_slice %11 {offsets = [0, 0], sizes = [8, 128], strides = [1, 1]} : vector<16x128xf32> to vector<8x128xf32>
    %50 = vector.broadcast %48 : vector<1x128xf32> to vector<8x128xf32>
    %51 = arith.mulf %50, %49 : vector<8x128xf32>
    %c0_25 = arith.constant 0 : index
    %c0_26 = arith.constant 0 : index
    %52 = vector.load %arg10[%c0_25, %c0_26] : memref<16x128xf32, #tpu.memory_space<vmem>>, vector<8x128xf32>
    tpu.vector_store %arg10[%c0_25, %c0_26], %51 {strides = array<i32>} : memref<16x128xf32, #tpu.memory_space<vmem>>, vector<8x128xf32>,
    %53 = vector.extract_strided_slice %13 {offsets = [1, 0], sizes = [1, 128], strides = [1, 1]} : vector<4x128xf32> to vector<1x128xf32>
    %54 = vector.extract_strided_slice %13 {offsets = [3, 0], sizes = [1, 128], strides = [1, 1]} : vector<4x128xf32> to vector<1x128xf32>
    %55 = vector.broadcast %54 : vector<1x128xf32> to vector<16x128xf32>
    %56 = arith.mulf %5, %55 : vector<16x128xf32>
    %cst_27 = arith.constant dense<0.000000e+00> : vector<16x128xf32>
    %57 = tpu.matmul %56, %6, %cst_27 {dimension_numbers = #tpu.dot_dimension_numbers<[1], [0], [0], [1], [0, 0, 1, 1], [], []>} : vector<16x128xf32>, vector<128x128xf32>, vector<16x128xf32> -> vector<16x128xf32>
    %58 = vector.broadcast %53 : vector<1x128xf32> to vector<16x128xf32>
    %59 = arith.addf %58, %57 : vector<16x128xf32>
    %60 = vector.broadcast %2 : f32 to vector<16x128xf32>
    %61 = arith.addf %59, %60 : vector<16x128xf32>
    %cst_28 = arith.constant 0.000000e+00 : f32
    %62 = vector.broadcast %cst_28 : f32 to vector<16x128xf32>
    %63 = arith.cmpf oge, %61, %62 : vector<16x128xf32>
    %cst_29 = arith.constant 0.00999999977 : f32
    %64 = vector.broadcast %cst_29 : f32 to vector<16x128xf32>
    %65 = arith.mulf %64, %61 : vector<16x128xf32>
    %66 = arith.select %63, %61, %65 : vector<16x128xi1>, vector<16x128xf32>
    %67 = arith.mulf %66, %3 : vector<16x128xf32>
    %cst_30 = arith.constant dense<0xFF800000> : vector<128xf32>
    %68 = vector.multi_reduction <maximumf>, %67, %cst_30 [0] : vector<16x128xf32> to vector<128xf32>
    %69 = vector.shape_cast %68 : vector<128xf32> to vector<1x128xf32>
    %70 = vector.broadcast %69 : vector<1x128xf32> to vector<16x128xf32>
    %71 = arith.subf %67, %70 : vector<16x128xf32>
    %72 = math.exp %71 : vector<16x128xf32>
    %cst_31 = arith.constant dense<0.000000e+00> : vector<128xf32>
    %73 = vector.multi_reduction <add>, %72, %cst_31 [0] : vector<16x128xf32> to vector<128xf32>
    %74 = vector.shape_cast %73 : vector<128xf32> to vector<1x128xf32>
    %75 = arith.addf %53, %54 : vector<1x128xf32>
    %76 = vector.broadcast %2 : f32 to vector<1x128xf32>
    %77 = arith.addf %75, %76 : vector<1x128xf32>
    %cst_32 = arith.constant 0.000000e+00 : f32
    %78 = vector.broadcast %cst_32 : f32 to vector<1x128xf32>
    %79 = arith.cmpf oge, %77, %78 : vector<1x128xf32>
    %cst_33 = arith.constant 0.00999999977 : f32
    %80 = vector.broadcast %cst_33 : f32 to vector<1x128xf32>
    %81 = arith.mulf %80, %77 : vector<1x128xf32>
    %82 = arith.select %79, %77, %81 : vector<1x128xi1>, vector<1x128xf32>
    %83 = arith.mulf %82, %4 : vector<1x128xf32>
    %84 = arith.subf %83, %69 : vector<1x128xf32>
    %85 = math.exp %84 : vector<1x128xf32>
    %86 = tpu.reciprocal %74 : vector<1x128xf32> -> vector<1x128xf32>
    %87 = arith.mulf %85, %86 : vector<1x128xf32>
    %88 = vector.extract_strided_slice %11 {offsets = [8, 0], sizes = [8, 128], strides = [1, 1]} : vector<16x128xf32> to vector<8x128xf32>
    %89 = vector.broadcast %87 : vector<1x128xf32> to vector<8x128xf32>
    %90 = arith.mulf %89, %88 : vector<8x128xf32>
    %c8 = arith.constant 8 : index
    %c0_34 = arith.constant 0 : index
    %91 = vector.load %arg10[%c8, %c0_34] : memref<16x128xf32, #tpu.memory_space<vmem>>, vector<8x128xf32>
    tpu.vector_store %arg10[%c8, %c0_34], %90 {strides = array<i32>} : memref<16x128xf32, #tpu.memory_space<vmem>>, vector<8x128xf32>,
    return
  }
  func.func @transform_0(%arg0: i32) -> (i32, i32) {
    %c0_i32 = arith.constant 0 : i32
    %c0_i32_0 = arith.constant 0 : i32
    return %c0_i32, %arg0 : i32, i32
  }
  func.func @transform_1(%arg0: i32) -> (i32, i32) {
    %c0_i32 = arith.constant 0 : i32
    %c0_i32_0 = arith.constant 0 : i32
    %c0_i32_1 = arith.constant 0 : i32
    return %c0_i32, %c0_i32_0 : i32, i32
  }
  func.func @transform_2(%arg0: i32) -> (i32, i32) {
    %c0_i32 = arith.constant 0 : i32
    %c0_i32_0 = arith.constant 0 : i32
    %c0_i32_1 = arith.constant 0 : i32
    return %c0_i32, %c0_i32_0 : i32, i32
  }
  func.func @transform_3(%arg0: i32) -> (i32, i32) {
    %c0_i32 = arith.constant 0 : i32
    %c0_i32_0 = arith.constant 0 : i32
    %c0_i32_1 = arith.constant 0 : i32
    return %c0_i32, %c0_i32_0 : i32, i32
  }
  func.func @transform_4(%arg0: i32) -> (i32, i32) {
    %c0_i32 = arith.constant 0 : i32
    %c0_i32_0 = arith.constant 0 : i32
    %c0_i32_1 = arith.constant 0 : i32
    return %c0_i32, %c0_i32_0 : i32, i32
  }
  func.func @transform_5(%arg0: i32) -> (i32, i32) {
    %c0_i32 = arith.constant 0 : i32
    %c0_i32_0 = arith.constant 0 : i32
    %c0_i32_1 = arith.constant 0 : i32
    return %c0_i32, %c0_i32_0 : i32, i32
  }
  func.func @transform_6(%arg0: i32) -> (i32, i32) {
    %c0_i32 = arith.constant 0 : i32
    %c0_i32_0 = arith.constant 0 : i32
    %c0_i32_1 = arith.constant 0 : i32
    return %c0_i32, %c0_i32_0 : i32, i32
  }
  func.func @transform_7(%arg0: i32) -> (i32, i32) {
    %c0_i32 = arith.constant 0 : i32
    %c0_i32_0 = arith.constant 0 : i32
    %c0_i32_1 = arith.constant 0 : i32
    return %c0_i32, %c0_i32_0 : i32, i32
  }
  func.func @transform_8(%arg0: i32) -> (i32, i32) {
    %c0_i32 = arith.constant 0 : i32
    %c0_i32_0 = arith.constant 0 : i32
    %c0_i32_1 = arith.constant 0 : i32
    return %c0_i32, %c0_i32_0 : i32, i32
  }
  func.func @transform_9(%arg0: i32) -> (i32, i32) {
    %c0_i32 = arith.constant 0 : i32
    %c0_i32_0 = arith.constant 0 : i32
    return %c0_i32, %arg0 : i32, i32
  }
}

</mosaic_0001>

<llo_original>
// kernel: tile.27
$region0: #{tile.27}
  %s0 = inlined_call_operand.vmem [shape: f32[16,8,16], index: 0, kind: input, shape index: {}]
  %s1 = inlined_call_operand.vmem [shape: f32[16,128], index: 1, kind: output, shape index: {}]
  %v2 = vld [vmem:[%s0] ss:$8 sm:$0xf]
  %v3 = vld [vmem:[%s0] ss:$8 sm:$0xf0]
  %vm4 = vcmask 1047556
  %v5 = vsel %vm4, %v3, %v2
  %vm6 = vcmask 130048
  %7 = vst.msk [vmem:[%s1] sm:$0xff] %vm6, %v5
  %s8 = scalar_lea.vmem %s0, 64
  %v9 = vld [vmem:[%s8] ss:$8 sm:$0xf]
  %s10 = scalar_lea.vmem %s0, 64
  %v11 = vld [vmem:[%s10] ss:$8 sm:$0xf0]
  %vm12 = vcmask 1047556
  %v13 = vsel %vm12, %v11, %v9
  %vm14 = vcmask 130048
  %s15 = scalar_lea.vmem %s1, 8
  %16 = vst.msk [vmem:[%s15] sm:$0xff] %vm14, %v13
  %s17 = scalar_lea.vmem %s0, 7
  %v18 = vld [vmem:[%s17] ss:$8 sm:$0xf]
  %s19 = scalar_lea.vmem %s0, 7
  %v20 = vld [vmem:[%s19] ss:$8 sm:$0xf0]
  %vm21 = vcmask 1047556
  %v22 = vsel %vm21, %v20, %v18
  %23 = vrot.lane.b32.xlu0 %v22, 112
  %v24 = vpop.permute.xlu0 %23
  %vm25 = vcmask 1048448
  %26 = vst.msk [vmem:[%s1] sm:$0xff] %vm25, %v24
  %s27 = scalar_lea.vmem %s0, 71
  %v28 = vld [vmem:[%s27] ss:$8 sm:$0xf]
  %s29 = scalar_lea.vmem %s0, 71
  %v30 = vld [vmem:[%s29] ss:$8 sm:$0xf0]
  %vm31 = vcmask 1047556
  %v32 = vsel %vm31, %v30, %v28
  %33 = vrot.lane.b32.xlu0 %v32, 112
  %v34 = vpop.permute.xlu0 %33
  %vm35 = vcmask 1048448
  %s36 = scalar_lea.vmem %s1, 8
  %37 = vst.msk [vmem:[%s36] sm:$0xff] %vm35, %v34
  %s38 = scalar_lea.vmem %s0, 6
  %v39 = vld [vmem:[%s38] ss:$8 sm:$0xf]
  %s40 = scalar_lea.vmem %s0, 6
  %v41 = vld [vmem:[%s40] ss:$8 sm:$0xf0]
  %vm42 = vcmask 1047556
  %v43 = vsel %vm42, %v41, %v39
  %44 = vrot.lane.b32.xlu0 %v43, 96
  %v45 = vpop.permute.xlu0 %44
  %vm46 = vcmask 917248
  %47 = vst.msk [vmem:[%s1] sm:$0xff] %vm46, %v45
  %s48 = scalar_lea.vmem %s0, 70
  %v49 = vld [vmem:[%s48] ss:$8 sm:$0xf]
  %s50 = scalar_lea.vmem %s0, 70
  %v51 = vld [vmem:[%s50] ss:$8 sm:$0xf0]
  %vm52 = vcmask 1047556
  %v53 = vsel %vm52, %v51, %v49
  %54 = vrot.lane.b32.xlu0 %v53, 96
  %v55 = vpop.permute.xlu0 %54
  %vm56 = vcmask 917248
  %s57 = scalar_lea.vmem %s1, 8
  %58 = vst.msk [vmem:[%s57] sm:$0xff] %vm56, %v55
  %s59 = scalar_lea.vmem %s0, 5
  %v60 = vld [vmem:[%s59] ss:$8 sm:$0xf]
  %s61 = scalar_lea.vmem %s0, 5
  %v62 = vld [vmem:[%s61] ss:$8 sm:$0xf0]
  %vm63 = vcmask 1047556
  %v64 = vsel %vm63, %v62, %v60
  %65 = vrot.lane.b32.xlu0 %v64, 80
  %v66 = vpop.permute.xlu0 %65
  %vm67 = vcmask 786048
  %68 = vst.msk [vmem:[%s1] sm:$0xff] %vm67, %v66
  %s69 = scalar_lea.vmem %s0, 69
  %v70 = vld [vmem:[%s69] ss:$8 sm:$0xf]
  %s71 = scalar_lea.vmem %s0, 69
  %v72 = vld [vmem:[%s71] ss:$8 sm:$0xf0]
  %vm73 = vcmask 1047556
  %v74 = vsel %vm73, %v72, %v70
  %75 = vrot.lane.b32.xlu0 %v74, 80
  %v76 = vpop.permute.xlu0 %75
  %vm77 = vcmask 786048
  %s78 = scalar_lea.vmem %s1, 8
  %79 = vst.msk [vmem:[%s78] sm:$0xff] %vm77, %v76
  %s80 = scalar_lea.vmem %s0, 4
  %v81 = vld [vmem:[%s80] ss:$8 sm:$0xf]
  %s82 = scalar_lea.vmem %s0, 4
  %v83 = vld [vmem:[%s82] ss:$8 sm:$0xf0]
  %vm84 = vcmask 1047556
  %v85 = vsel %vm84, %v83, %v81
  %86 = vrot.lane.b32.xlu0 %v85, 64
  %v87 = vpop.permute.xlu0 %86
  %vm88 = vcmask 654848
  %89 = vst.msk [vmem:[%s1] sm:$0xff] %vm88, %v87
  %s90 = scalar_lea.vmem %s0, 68
  %v91 = vld [vmem:[%s90] ss:$8 sm:$0xf]
  %s92 = scalar_lea.vmem %s0, 68
  %v93 = vld [vmem:[%s92] ss:$8 sm:$0xf0]
  %vm94 = vcmask 1047556
  %v95 = vsel %vm94, %v93, %v91
  %96 = vrot.lane.b32.xlu0 %v95, 64
  %v97 = vpop.permute.xlu0 %96
  %vm98 = vcmask 654848
  %s99 = scalar_lea.vmem %s1, 8
  %100 = vst.msk [vmem:[%s99] sm:$0xff] %vm98, %v97
  %s101 = scalar_lea.vmem %s0, 3
  %v102 = vld [vmem:[%s101] ss:$8 sm:$0xf]
  %s103 = scalar_lea.vmem %s0, 3
  %v104 = vld [vmem:[%s103] ss:$8 sm:$0xf0]
  %vm105 = vcmask 1047556
  %v106 = vsel %vm105, %v104, %v102
  %107 = vrot.lane.b32.xlu0 %v106, 48
  %v108 = vpop.permute.xlu0 %107
  %vm109 = vcmask 523648
  %110 = vst.msk [vmem:[%s1] sm:$0xff] %vm109, %v108
  %s111 = scalar_lea.vmem %s0, 67
  %v112 = vld [vmem:[%s111] ss:$8 sm:$0xf]
  %s113 = scalar_lea.vmem %s0, 67
  %v114 = vld [vmem:[%s113] ss:$8 sm:$0xf0]
  %vm115 = vcmask 1047556
  %v116 = vsel %vm115, %v114, %v112
  %117 = vrot.lane.b32.xlu0 %v116, 48
  %v118 = vpop.permute.xlu0 %117
  %vm119 = vcmask 523648
  %s120 = scalar_lea.vmem %s1, 8
  %121 = vst.msk [vmem:[%s120] sm:$0xff] %vm119, %v118
  %s122 = scalar_lea.vmem %s0, 2
  %v123 = vld [vmem:[%s122] ss:$8 sm:$0xf]
  %s124 = scalar_lea.vmem %s0, 2
  %v125 = vld [vmem:[%s124] ss:$8 sm:$0xf0]
  %vm126 = vcmask 1047556
  %v127 = vsel %vm126, %v125, %v123
  %128 = vrot.lane.b32.xlu0 %v127, 32
  %v129 = vpop.permute.xlu0 %128
  %vm130 = vcmask 392448
  %131 = vst.msk [vmem:[%s1] sm:$0xff] %vm130, %v129
  %s132 = scalar_lea.vmem %s0, 66
  %v133 = vld [vmem:[%s132] ss:$8 sm:$0xf]
  %s134 = scalar_lea.vmem %s0, 66
  %v135 = vld [vmem:[%s134] ss:$8 sm:$0xf0]
  %vm136 = vcmask 1047556
  %v137 = vsel %vm136, %v135, %v133
  %138 = vrot.lane.b32.xlu0 %v137, 32
  %v139 = vpop.permute.xlu0 %138
  %vm140 = vcmask 392448
  %s141 = scalar_lea.vmem %s1, 8
  %142 = vst.msk [vmem:[%s141] sm:$0xff] %vm140, %v139
  %s143 = scalar_lea.vmem %s0, 1
  %v144 = vld [vmem:[%s143] ss:$8 sm:$0xf]
  %s145 = scalar_lea.vmem %s0, 1
  %v146 = vld [vmem:[%s145] ss:$8 sm:$0xf0]
  %vm147 = vcmask 1047556
  %v148 = vsel %vm147, %v146, %v144
  %149 = vrot.lane.b32.xlu0 %v148, 16
  %v150 = vpop.permute.xlu0 %149
  %vm151 = vcmask 261248
  %152 = vst.msk [vmem:[%s1] sm:$0xff] %vm151, %v150
  %s153 = scalar_lea.vmem %s0, 65
  %v154 = vld [vmem:[%s153] ss:$8 sm:$0xf]
  %s155 = scalar_lea.vmem %s0, 65
  %v156 = vld [vmem:[%s155] ss:$8 sm:$0xf0]
  %vm157 = vcmask 1047556
  %v158 = vsel %vm157, %v156, %v154
  %159 = vrot.lane.b32.xlu0 %v158, 16
  %v160 = vpop.permute.xlu0 %159
  %vm161 = vcmask 261248
  %s162 = scalar_lea.vmem %s1, 8
  %163 = vst.msk [vmem:[%s162] sm:$0xff] %vm161, %v160

// kernel: gat_block_pallas.1
$region0: #{gat_block_pallas.1}
  #allocation0 [shape = 'u32[]', space=smem, size = 0x4, offset = 0x4, fixed_abs, tag = 'smem constant byte address 0x4 - core index']
  #allocation1 [shape = 'u32[144,128]{1,0:T(1,128)}', space=vmem, size = 0x12000, scoped, tag = 'internal scratch']
  #allocation2 [shape = 'f32[1,1]{1,0:T(1,128)S(1)}', space=vmem, size = 0x200, scoped, tag = 'scoped memory for gat_block_pallas.1']
  %s0 = inlined_call_operand.vmem [shape: f32[4,256], index: 0, kind: input, shape index: {}]
  %s1 = inlined_call_operand.vmem [shape: f32[16,4], index: 1, kind: input, shape index: {}]
  %s2 = inlined_call_operand.vmem [shape: f32[16,1], index: 2, kind: input, shape index: {}]
  %s3 = inlined_call_operand.vmem [shape: f32[4,16], index: 3, kind: input, shape index: {}]
  %s4 = inlined_call_operand.<no memory space> [shape: f32[1,1], index: 4, kind: input, shape index: {}]
  %s5 = inlined_call_operand.vmem [shape: f32[16,128], index: 5, kind: input, shape index: {}]
  %s6 = inlined_call_operand.vmem [shape: f32[1,128], index: 6, kind: input, shape index: {}]
  %s7 = inlined_call_operand.vmem [shape: f32[16,128], index: 7, kind: input, shape index: {}]
  %s8 = inlined_call_operand.vmem [shape: f32[128,128], index: 8, kind: input, shape index: {}]
  %s9 = inlined_call_operand.vmem [shape: f32[16,256], index: 9, kind: output, shape index: {}]
  %s10 = sld [smem:[#allocation0]]
  $region103: #{gat_block_pallas.1} parent=0
    _
  %s12 = ssub.s32 1, %s10
  %s13 = scalar_select 0, %s12, %s10
  %v14 = vstv %s4
  %15 = vst [vmem:[#allocation2] sm:$0x1] %v14
  $region1: #{gat_block_pallas.1} parent=0
    #allocation3 [shape = 'u8[16384]{0}', space=vmem, size = 0x4000, scoped, tag = 'output window, operand 0']
    loop: start=0, step=1, limit=4
    $region2: #{gat_block_pallas.1} parent=1 // loop_pre_header
      _
    $region3: #{gat_block_pallas.1} parent=1 // loop_header
      %s17 = sphi 0, %s21
      %p18 = scmp.ge.s32.totalorder %s17, 4
      %s27 = sphi 0, %s29
      %s30 = sphi 0, %s27
      %s31 = sphi 0, %s30
      %s47 = sphi 0, %s31
      %s51 = sphi 0, %s51
      %s53 = sphi 0, %s51
      %s54 = sphi 0, %s53
      %s68 = sphi 0, %s54
      %s72 = sphi 0, %s72
      %s74 = sphi 0, %s72
      %s75 = sphi 0, %s74
      %s89 = sphi 0, %s75
      %s93 = sphi 0, %s93
      %s95 = sphi 0, %s93
      %s96 = sphi 0, %s95
      %s110 = sphi 0, %s96
      %s114 = sphi 0, %s114
      %s116 = sphi 0, %s114
      %s117 = sphi 0, %s116
      %s131 = sphi 0, %s117
      %s135 = sphi 0, %s135
      %s137 = sphi 0, %s135
      %s138 = sphi 0, %s137
      %s152 = sphi 0, %s138
      %s156 = sphi 0, %s156
      %s158 = sphi 0, %s156
      %s159 = sphi 0, %s158
      %s173 = sphi 0, %s159
      %s177 = sphi 0, %s177
      %s179 = sphi 0, %s177
      %s180 = sphi 0, %s179
      %s194 = sphi 0, %s180
      %s198 = sphi 0, %s198
      %s200 = sphi 0, %s198
      %s201 = sphi 0, %s200
      %s215 = sphi 0, %s201
      %s221 = sphi 0, %s223
      %s224 = sphi 0, %s221
      %s225 = sphi 0, %s224
      %s241 = sphi 0, %s225
    $region4: #{gat_block_pallas.1} parent=1 // loop_header_branch
      %20 = sbr.rel (%p18) target = $region8
    $region5: #{gat_block_pallas.1} parent=1 // loop_body
      %s22 = ssub.s32 %s17, 1
      %s23 = ssub.s32 %s17, 2
      %s24 = sadd.s32 %s17, 1
      %s25 = ssub.s32 %s17, %s24
      %p26 = scmp.eq.s32.totalorder %s25, 0
      %s28 = sadd.s32 %s27, 1
      %s29 = scalar_select %p26, %s27, %s28
      %p32 = pneg %p26
      %p33 = scmp.eq.s32.totalorder %s17, 1
      %p34 = por %p32, %p33
      %p35 = scmp.ne.s32.totalorder %s27, %s30
      %p36 = scmp.eq.s32.totalorder %s17, 0
      %p37 = por %p35, %p36
      %p38 = scmp.ne.s32.totalorder %s27, %s30
      %p39 = scmp.eq.s32.totalorder %s22, 1
      %p40 = por %p38, %p39
      %p41 = scmp.ne.s32.totalorder %s30, %s31
      %p42 = scmp.eq.s32.totalorder %s22, 0
      %p43 = por %p41, %p42
      %p44 = scmp.ne.s32.totalorder %s30, %s31
      %p45 = scmp.eq.s32.totalorder %s23, 1
      %p46 = por %p44, %p45
      %p48 = scmp.ne.s32.totalorder %s31, %s47
      %p49 = scmp.eq.s32.totalorder %s23, 0
      %p50 = por %p48, %p49
      %s52 = sadd.s32 %s51, 1
      %p55 = scmp.eq.s32.totalorder %s17, 1
      %p56 = scmp.ne.s32.totalorder %s51, %s53
      %p57 = scmp.eq.s32.totalorder %s17, 0
      %p58 = por %p56, %p57
      %p59 = scmp.ne.s32.totalorder %s51, %s53
      %p60 = scmp.eq.s32.totalorder %s22, 1
      %p61 = por %p59, %p60
      %p62 = scmp.ne.s32.totalorder %s53, %s54
      %p63 = scmp.eq.s32.totalorder %s22, 0
      %p64 = por %p62, %p63
      %p65 = scmp.ne.s32.totalorder %s53, %s54
      %p66 = scmp.eq.s32.totalorder %s23, 1
      %p67 = por %p65, %p66
      %p69 = scmp.ne.s32.totalorder %s54, %s68
      %p70 = scmp.eq.s32.totalorder %s23, 0
      %p71 = por %p69, %p70
      %s73 = sadd.s32 %s72, 1
      %p76 = scmp.eq.s32.totalorder %s17, 1
      %p77 = scmp.ne.s32.totalorder %s72, %s74
      %p78 = scmp.eq.s32.totalorder %s17, 0
      %p79 = por %p77, %p78
      %p80 = scmp.ne.s32.totalorder %s72, %s74
      %p81 = scmp.eq.s32.totalorder %s22, 1
      %p82 = por %p80, %p81
      %p83 = scmp.ne.s32.totalorder %s74, %s75
      %p84 = scmp.eq.s32.totalorder %s22, 0
      %p85 = por %p83, %p84
      %p86 = scmp.ne.s32.totalorder %s74, %s75
      %p87 = scmp.eq.s32.totalorder %s23, 1
      %p88 = por %p86, %p87
      %p90 = scmp.ne.s32.totalorder %s75, %s89
      %p91 = scmp.eq.s32.totalorder %s23, 0
      %p92 = por %p90, %p91
      %s94 = sadd.s32 %s93, 1
      %p97 = scmp.eq.s32.totalorder %s17, 1
      %p98 = scmp.ne.s32.totalorder %s93, %s95
      %p99 = scmp.eq.s32.totalorder %s17, 0
      %p100 = por %p98, %p99
      %p101 = scmp.ne.s32.totalorder %s93, %s95
      %p102 = scmp.eq.s32.totalorder %s22, 1
      %p103 = por %p101, %p102
      %p104 = scmp.ne.s32.totalorder %s95, %s96
      %p105 = scmp.eq.s32.totalorder %s22, 0
      %p106 = por %p104, %p105
      %p107 = scmp.ne.s32.totalorder %s95, %s96
      %p108 = scmp.eq.s32.totalorder %s23, 1
      %p109 = por %p107, %p108
      %p111 = scmp.ne.s32.totalorder %s96, %s110
      %p112 = scmp.eq.s32.totalorder %s23, 0
      %p113 = por %p111, %p112
      %s115 = sadd.s32 %s114, 1
      %p118 = scmp.eq.s32.totalorder %s17, 1
      %p119 = scmp.ne.s32.totalorder %s114, %s116
      %p120 = scmp.eq.s32.totalorder %s17, 0
      %p121 = por %p119, %p120
      %p122 = scmp.ne.s32.totalorder %s114, %s116
      %p123 = scmp.eq.s32.totalorder %s22, 1
      %p124 = por %p122, %p123
      %p125 = scmp.ne.s32.totalorder %s116, %s117
      %p126 = scmp.eq.s32.totalorder %s22, 0
      %p127 = por %p125, %p126
      %p128 = scmp.ne.s32.totalorder %s116, %s117
      %p129 = scmp.eq.s32.totalorder %s23, 1
      %p130 = por %p128, %p129
      %p132 = scmp.ne.s32.totalorder %s117, %s131
      %p133 = scmp.eq.s32.totalorder %s23, 0
      %p134 = por %p132, %p133
      %s136 = sadd.s32 %s135, 1
      %p139 = scmp.eq.s32.totalorder %s17, 1
      %p140 = scmp.ne.s32.totalorder %s135, %s137
      %p141 = scmp.eq.s32.totalorder %s17, 0
      %p142 = por %p140, %p141
      %p143 = scmp.ne.s32.totalorder %s135, %s137
      %p144 = scmp.eq.s32.totalorder %s22, 1
      %p145 = por %p143, %p144
      %p146 = scmp.ne.s32.totalorder %s137, %s138
      %p147 = scmp.eq.s32.totalorder %s22, 0
      %p148 = por %p146, %p147
      %p149 = scmp.ne.s32.totalorder %s137, %s138
      %p150 = scmp.eq.s32.totalorder %s23, 1
      %p151 = por %p149, %p150
      %p153 = scmp.ne.s32.totalorder %s138, %s152
      %p154 = scmp.eq.s32.totalorder %s23, 0
      %p155 = por %p153, %p154
      %s157 = sadd.s32 %s156, 1
      %p160 = scmp.eq.s32.totalorder %s17, 1
      %p161 = scmp.ne.s32.totalorder %s156, %s158
      %p162 = scmp.eq.s32.totalorder %s17, 0
      %p163 = por %p161, %p162
      %p164 = scmp.ne.s32.totalorder %s156, %s158
      %p165 = scmp.eq.s32.totalorder %s22, 1
      %p166 = por %p164, %p165
      %p167 = scmp.ne.s32.totalorder %s158, %s159
      %p168 = scmp.eq.s32.totalorder %s22, 0
      %p169 = por %p167, %p168
      %p170 = scmp.ne.s32.totalorder %s158, %s159
      %p171 = scmp.eq.s32.totalorder %s23, 1
      %p172 = por %p170, %p171
      %p174 = scmp.ne.s32.totalorder %s159, %s173
      %p175 = scmp.eq.s32.totalorder %s23, 0
      %p176 = por %p174, %p175
      %s178 = sadd.s32 %s177, 1
      %p181 = scmp.eq.s32.totalorder %s17, 1
      %p182 = scmp.ne.s32.totalorder %s177, %s179
      %p183 = scmp.eq.s32.totalorder %s17, 0
      %p184 = por %p182, %p183
      %p185 = scmp.ne.s32.totalorder %s177, %s179
      %p186 = scmp.eq.s32.totalorder %s22, 1
      %p187 = por %p185, %p186
      %p188 = scmp.ne.s32.totalorder %s179, %s180
      %p189 = scmp.eq.s32.totalorder %s22, 0
      %p190 = por %p188, %p189
      %p191 = scmp.ne.s32.totalorder %s179, %s180
      %p192 = scmp.eq.s32.totalorder %s23, 1
      %p193 = por %p191, %p192
      %p195 = scmp.ne.s32.totalorder %s180, %s194
      %p196 = scmp.eq.s32.totalorder %s23, 0
      %p197 = por %p195, %p196
      %s199 = sadd.s32 %s198, 1
      %p202 = scmp.eq.s32.totalorder %s17, 1
      %p203 = scmp.ne.s32.totalorder %s198, %s200
      %p204 = scmp.eq.s32.totalorder %s17, 0
      %p205 = por %p203, %p204
      %p206 = scmp.ne.s32.totalorder %s198, %s200
      %p207 = scmp.eq.s32.totalorder %s22, 1
      %p208 = por %p206, %p207
      %p209 = scmp.ne.s32.totalorder %s200, %s201
      %p210 = scmp.eq.s32.totalorder %s22, 0
      %p211 = por %p209, %p210
      %p212 = scmp.ne.s32.totalorder %s200, %s201
      %p213 = scmp.eq.s32.totalorder %s23, 1
      %p214 = por %p212, %p213
      %p216 = scmp.ne.s32.totalorder %s201, %s215
      %p217 = scmp.eq.s32.totalorder %s23, 0
      %p218 = por %p216, %p217
      %s219 = ssub.s32 %s17, %s24
      %p220 = scmp.eq.s32.totalorder %s219, 0
      %s222 = sadd.s32 %s221, 1
      %s223 = scalar_select %p220, %s221, %s222
      %p226 = pneg %p220
      %p227 = scmp.eq.s32.totalorder %s17, 1
      %p228 = por %p226, %p227
      %p229 = scmp.ne.s32.totalorder %s221, %s224
      %p230 = scmp.eq.s32.totalorder %s17, 0
      %p231 = por %p229, %p230
      %p232 = scmp.ne.s32.totalorder %s221, %s224
      %p233 = scmp.eq.s32.totalorder %s22, 1
      %p234 = por %p232, %p233
      %p235 = scmp.ne.s32.totalorder %s224, %s225
      %p236 = scmp.eq.s32.totalorder %s22, 0
      %p237 = por %p235, %p236
      %p238 = scmp.ne.s32.totalorder %s224, %s225
      %p239 = scmp.eq.s32.totalorder %s23, 1
      %p240 = por %p238, %p239
      %p242 = scmp.ne.s32.totalorder %s225, %s241
      %p243 = scmp.eq.s32.totalorder %s23, 0
      %p244 = por %p242, %p243
      %p245 = scmp.le.s32.totalorder 1, %s17
      %p246 = scmp.lt.s32.totalorder %s17, 3
      %p247 = pnand %p245, %p246
      %p248 = pneg %p247
      // Predicated region
      $region9: #{gat_block_pallas.1} parent=5 // pred_check
        _
      $region10: #{gat_block_pallas.1} parent=5 // pred_check_branch
        %250 = sbr.rel (%p247) target = $region12
      $region11: #{gat_block_pallas.1} parent=5 // pred_region
        %s251 = ssub.s32 %s17, 1
        // Predicated region
        $region13: #{gat_block_pallas.1} parent=11 // pred_check
          %p252 = pneg %p64
        $region14: #{gat_block_pallas.1} parent=11 // pred_check_branch
          %254 = sbr.rel (%p252) target = $region16
        $region15: #{gat_block_pallas.1} parent=11 // pred_region
          _
        $region16: #{gat_block_pallas.1} parent=11 // pred_fallthru
          _
        // Predicated region
        $region17: #{gat_block_pallas.1} parent=11 // pred_check
          %p255 = pneg %p85
        $region18: #{gat_block_pallas.1} parent=11 // pred_check_branch
          %257 = sbr.rel (%p255) target = $region20
        $region19: #{gat_block_pallas.1} parent=11 // pred_region
          _
        $region20: #{gat_block_pallas.1} parent=11 // pred_fallthru
          _
        // Predicated region
        $region21: #{gat_block_pallas.1} parent=11 // pred_check
          %p258 = pneg %p106
        $region22: #{gat_block_pallas.1} parent=11 // pred_check_branch
          %260 = sbr.rel (%p258) target = $region24
        $region23: #{gat_block_pallas.1} parent=11 // pred_region
          _
        $region24: #{gat_block_pallas.1} parent=11 // pred_fallthru
          _
        // Predicated region
        $region25: #{gat_block_pallas.1} parent=11 // pred_check
          %p261 = pneg %p127
        $region26: #{gat_block_pallas.1} parent=11 // pred_check_branch
          %263 = sbr.rel (%p261) target = $region28
        $region27: #{gat_block_pallas.1} parent=11 // pred_region
          _
        $region28: #{gat_block_pallas.1} parent=11 // pred_fallthru
          _
        // Predicated region
        $region29: #{gat_block_pallas.1} parent=11 // pred_check
          %p264 = pneg %p148
        $region30: #{gat_block_pallas.1} parent=11 // pred_check_branch
          %266 = sbr.rel (%p264) target = $region32
        $region31: #{gat_block_pallas.1} parent=11 // pred_region
          _
        $region32: #{gat_block_pallas.1} parent=11 // pred_fallthru
          _
        // Predicated region
        $region33: #{gat_block_pallas.1} parent=11 // pred_check
          %p267 = pneg %p169
        $region34: #{gat_block_pallas.1} parent=11 // pred_check_branch
          %269 = sbr.rel (%p267) target = $region36
        $region35: #{gat_block_pallas.1} parent=11 // pred_region
          _
        $region36: #{gat_block_pallas.1} parent=11 // pred_fallthru
          _
        // Predicated region
        $region37: #{gat_block_pallas.1} parent=11 // pred_check
          %p270 = pneg %p190
        $region38: #{gat_block_pallas.1} parent=11 // pred_check_branch
          %272 = sbr.rel (%p270) target = $region40
        $region39: #{gat_block_pallas.1} parent=11 // pred_region
          _
        $region40: #{gat_block_pallas.1} parent=11 // pred_fallthru
          _
        // Predicated region
        $region41: #{gat_block_pallas.1} parent=11 // pred_check
          %p273 = pneg %p211
        $region42: #{gat_block_pallas.1} parent=11 // pred_check_branch
          %275 = sbr.rel (%p273) target = $region44
        $region43: #{gat_block_pallas.1} parent=11 // pred_region
          _
        $region44: #{gat_block_pallas.1} parent=11 // pred_fallthru
          _
      $region12: #{gat_block_pallas.1} parent=5 // pred_fallthru
        _
      %p276 = scmp.lt.s32.totalorder %s17, 2
      // Predicated region
      $region45: #{gat_block_pallas.1} parent=5 // pred_check
        %p277 = pneg %p276
      $region46: #{gat_block_pallas.1} parent=5 // pred_check_branch
        %279 = sbr.rel (%p277) target = $region48
      $region47: #{gat_block_pallas.1} parent=5 // pred_region
        // Predicated region
        $region49: #{gat_block_pallas.1} parent=47 // pred_check
          %p280 = pneg %p37
        $region50: #{gat_block_pallas.1} parent=47 // pred_check_branch
          %282 = sbr.rel (%p280) target = $region52
        $region51: #{gat_block_pallas.1} parent=47 // pred_region
          %p283 = scmp.lt.s32.totalorder %s17, 1
          %s284 = scalar_select %p283, %s17, 1
          %s285 = smul.addr %s284, 4
          %s286 = scalar_lea.vmem %s0, %s285
        $region52: #{gat_block_pallas.1} parent=47 // pred_fallthru
          _
      $region48: #{gat_block_pallas.1} parent=5 // pred_fallthru
        _
      %p287 = scmp.le.s32.totalorder 1, %s17
      %p288 = scmp.lt.s32.totalorder %s17, 3
      %p289 = pnand %p287, %p288
      %p290 = pneg %p289
      // Predicated region
      $region53: #{gat_block_pallas.1} parent=5 // pred_check
        _
      $region54: #{gat_block_pallas.1} parent=5 // pred_check_branch
        %292 = sbr.rel (%p289) target = $region56
      $region55: #{gat_block_pallas.1} parent=5 // pred_region
        %s293 = ssub.s32 %s17, 1
        %p294 = scmp.lt.s32.totalorder %s22, 1
        %s295 = scalar_select %p294, %s22, 1
        %s296 = smul.addr %s295, 4
        %s297 = scalar_lea.vmem %s0, %s296
        %p298 = pneg %p43
        %p299 = pneg %p40
        %p300 = pneg %p64
        %p301 = pneg %p61
        %p302 = pneg %p85
        %p303 = pneg %p82
        %p304 = pneg %p106
        %p305 = pneg %p103
        %p306 = pneg %p127
        %p307 = pneg %p124
        %p308 = pneg %p148
        %p309 = pneg %p145
        %p310 = pneg %p169
        %p311 = pneg %p166
        %p312 = pneg %p190
        %p313 = pneg %p187
        %p314 = pneg %p211
        %p315 = pneg %p208
        %p316 = pneg %p237
        %p317 = pneg %p234
        %s318 = sand.u32 %s224, 1
        %s319 = sand.u32 %s224, 1
        %s320 = smul.addr %s319, 16
        %s321 = scalar_lea.vmem [#allocation3], %s320
        %p322 = scmp.lt.s32.totalorder %s22, 1
        %s323 = scalar_select %p322, %s22, 1
        %s324 = smul.addr %s323, 4
        %s325 = scalar_lea.vmem %s0, %s324
        %v326 = vld [vmem:[%s325] sm:$0xf]
        %v327 = vld [vmem:[#allocation2] sm:$0x1]
        %s328 = vtos %v327
        %v329 = vld [vmem:[%s5] sm:$0xff]
        %v330 = vld [vmem:[%s5 + $0x8] sm:$0xff]
        %v331 = vld [vmem:[%s6] sm:$0x1]
        %v332 = vld [vmem:[%s7] sm:$0xff]
        %v333 = vld [vmem:[%s7 + $0x8] sm:$0xff]
        %v334 = vld [vmem:[%s8] sm:$0xff]
        %v335 = vld [vmem:[%s8 + $0x8] sm:$0xff]
        %v336 = vld [vmem:[%s8 + $0x10] sm:$0xff]
        %v337 = vld [vmem:[%s8 + $0x18] sm:$0xff]
        %v338 = vld [vmem:[%s8 + $0x20] sm:$0xff]
        %v339 = vld [vmem:[%s8 + $0x28] sm:$0xff]
        %v340 = vld [vmem:[%s8 + $0x30] sm:$0xff]
        %v341 = vld [vmem:[%s8 + $0x38] sm:$0xff]
        %v342 = vld [vmem:[%s8 + $0x40] sm:$0xff]
        %v343 = vld [vmem:[%s8 + $0x48] sm:$0xff]
        %v344 = vld [vmem:[%s8 + $0x50] sm:$0xff]
        %v345 = vld [vmem:[%s8 + $0x58] sm:$0xff]
        %v346 = vld [vmem:[%s8 + $0x60] sm:$0xff]
        %v347 = vld [vmem:[%s8 + $0x68] sm:$0xff]
        %v348 = vld [vmem:[%s8 + $0x70] sm:$0xff]
        %v349 = vld [vmem:[%s8 + $0x78] sm:$0xff]
        %v350 = vld [vmem:[%s1] sm:$0xff]
        %v351 = vld [vmem:[%s1 + $0x8] sm:$0xff]
        %v352 = vld [vmem:[%s2] sm:$0xff]
        %v353 = vld [vmem:[%s2 + $0x8] sm:$0xff]
        %355 = vset.pattern.permute.xlu0 0
        %356 = vperm.xlu0 %355, %v352
        %v357 = vpop.permute.xlu0 %356
        %360 = vset.pattern.permute.xlu0 0
        %361 = vperm.xlu0 %360, %v353
        %v362 = vpop.permute.xlu0 %361
        %vm364 = vcmask 31744
        %v366 = vsel %vm364, %v350, 0
        %v369 = vsel %vm364, %v351, 0
        %vm371 = vcmask 1043456
        %v373 = vsel %vm371, %v326, 0
        %375 = vmatprep.subr.mxu0 0.0
        %376 = vmatpush1.msra.mxu0 0.0
        %377 = vmatprep.subr.mxu0 0.0
        %378 = vmatpush1.msra.mxu0 0.0
        %379 = vmatprep.subr.mxu0 0.0
        %380 = vmatpush1.msra.mxu0 0.0
        %381 = vmatprep.subr.mxu0 0.0
        %382 = vmatpush1.msra.mxu0 0.0
        %383 = vmatprep.subr.mxu0 0.0
        %384 = vmatpush1.msra.mxu0 0.0
        %385 = vmatprep.subr.mxu0 0.0
        %386 = vmatpush1.msra.mxu0 0.0
        %387 = vmatprep.subr.mxu0 0.0
        %388 = vmatpush1.msra.mxu0 0.0
        %389 = vmatprep.subr.mxu0 0.0
        %390 = vmatpush1.msra.mxu0 0.0
        %391 = vmatprep.subr.mxu0 0.0
        %392 = vmatpush1.msra.mxu0 0.0
        %393 = vmatprep.subr.mxu0 0.0
        %394 = vmatpush1.msra.mxu0 0.0
        %395 = vmatprep.subr.mxu0 0.0
        %396 = vmatpush1.msra.mxu0 0.0
        %397 = vmatprep.subr.mxu0 0.0
        %398 = vmatpush1.msra.mxu0 0.0
        %399 = vmatprep.subr.mxu0 0.0
        %400 = vmatpush1.msra.mxu0 0.0
        %401 = vmatprep.subr.mxu0 0.0
        %402 = vmatpush1.msra.mxu0 0.0
        %403 = vmatprep.subr.mxu0 0.0
        %404 = vmatpush1.msra.mxu0 0.0
        %405 = vmatprep.subr.mxu0 0.0
        %406 = vmatpush1.msra.mxu0 %v373
        %407 = vmatprep.subr.mxu0 0.0
        %408 = vmatpush2.msra.mxu0 0.0
        %409 = vmatprep.subr.mxu0 0.0
        %410 = vmatpush2.msra.mxu0 0.0
        %411 = vmatprep.subr.mxu0 0.0
        %412 = vmatpush2.msra.mxu0 0.0
        %413 = vmatprep.subr.mxu0 0.0
        %414 = vmatpush2.msra.mxu0 0.0
        %415 = vmatprep.subr.mxu0 0.0
        %416 = vmatpush2.msra.mxu0 0.0
        %417 = vmatprep.subr.mxu0 0.0
        %418 = vmatpush2.msra.mxu0 0.0
        %419 = vmatprep.subr.mxu0 0.0
        %420 = vmatpush2.msra.mxu0 0.0
        %421 = vmatprep.subr.mxu0 0.0
        %422 = vmatpush2.msra.mxu0 0.0
        %423 = vmatprep.subr.mxu0 0.0
        %424 = vmatpush2.msra.mxu0 0.0
        %425 = vmatprep.subr.mxu0 0.0
        %426 = vmatpush2.msra.mxu0 0.0
        %427 = vmatprep.subr.mxu0 0.0
        %428 = vmatpush2.msra.mxu0 0.0
        %429 = vmatprep.subr.mxu0 0.0
        %430 = vmatpush2.msra.mxu0 0.0
        %431 = vmatprep.subr.mxu0 0.0
        %432 = vmatpush2.msra.mxu0 0.0
        %433 = vmatprep.subr.mxu0 0.0
        %434 = vmatpush2.msra.mxu0 0.0
        %435 = vmatprep.subr.mxu0 0.0
        %436 = vmatpush2.msra.mxu0 0.0
        %437 = vmatprep.subr.mxu0 0.0
        %438 = vmatpush2.msra.mxu0 0.0
        %439 = vmatprep.mubr.f32.mxu0 0.0
        %440 = vmatmul.mubr.f32.gmra.mxu0 %v366
        %v441 = vpop.f32.mrf.mxu0
        %v442 = vadd.f32 %v357, %v441
        %v443 = vpop.f32.mrf.mxu0
        %444 = vmatprep.mubr.f32.mxu0 0.0
        %445 = vmatmul.mubr.f32.gmra.mxu0 %v369
        %v446 = vpop.f32.mrf.mxu0
        %v447 = vadd.f32 %v362, %v446
        %v448 = vpop.f32.mrf.mxu0
        %449 = vdwg.mxu0
        %v450 = vld [vmem:[%s3] sm:$0xf]
        %vm451 = vcmask 130048
        %v453 = vsel %vm451, %v450, 0
        %455 = vmatprep.subr.mxu0 0.0
        %456 = vmatpush1.msra.mxu0 0.0
        %457 = vmatprep.subr.mxu0 0.0
        %458 = vmatpush1.msra.mxu0 0.0
        %459 = vmatprep.subr.mxu0 0.0
        %460 = vmatpush1.msra.mxu0 0.0
        %461 = vmatprep.subr.mxu0 0.0
        %462 = vmatpush1.msra.mxu0 0.0
        %463 = vmatprep.subr.mxu0 0.0
        %464 = vmatpush1.msra.mxu0 0.0
        %465 = vmatprep.subr.mxu0 0.0
        %466 = vmatpush1.msra.mxu0 0.0
        %467 = vmatprep.subr.mxu0 0.0
        %468 = vmatpush1.msra.mxu0 0.0
        %469 = vmatprep.subr.mxu0 0.0
        %470 = vmatpush1.msra.mxu0 0.0
        %471 = vmatprep.subr.mxu0 0.0
        %472 = vmatpush1.msra.mxu0 0.0
        %473 = vmatprep.subr.mxu0 0.0
        %474 = vmatpush1.msra.mxu0 0.0
        %475 = vmatprep.subr.mxu0 0.0
        %476 = vmatpush1.msra.mxu0 0.0
        %477 = vmatprep.subr.mxu0 0.0
        %478 = vmatpush1.msra.mxu0 0.0
        %479 = vmatprep.subr.mxu0 0.0
        %480 = vmatpush1.msra.mxu0 0.0
        %481 = vmatprep.subr.mxu0 0.0
        %482 = vmatpush1.msra.mxu0 0.0
        %483 = vmatprep.subr.mxu0 0.0
        %484 = vmatpush1.msra.mxu0 %v447
        %485 = vmatprep.subr.mxu0 0.0
        %486 = vmatpush1.msra.mxu0 %v442
        %487 = vmatprep.subr.mxu0 0.0
        %488 = vmatpush2.msra.mxu0 0.0
        %489 = vmatprep.subr.mxu0 0.0
        %490 = vmatpush2.msra.mxu0 0.0
        %491 = vmatprep.subr.mxu0 0.0
        %492 = vmatpush2.msra.mxu0 0.0
        %493 = vmatprep.subr.mxu0 0.0
        %494 = vmatpush2.msra.mxu0 0.0
        %495 = vmatprep.subr.mxu0 0.0
        %496 = vmatpush2.msra.mxu0 0.0
        %497 = vmatprep.subr.mxu0 0.0
        %498 = vmatpush2.msra.mxu0 0.0
        %499 = vmatprep.subr.mxu0 0.0
        %500 = vmatpush2.msra.mxu0 0.0
        %501 = vmatprep.subr.mxu0 0.0
        %502 = vmatpush2.msra.mxu0 0.0
        %503 = vmatprep.subr.mxu0 0.0
        %504 = vmatpush2.msra.mxu0 0.0
        %505 = vmatprep.subr.mxu0 0.0
        %506 = vmatpush2.msra.mxu0 0.0
        %507 = vmatprep.subr.mxu0 0.0
        %508 = vmatpush2.msra.mxu0 0.0
        %509 = vmatprep.subr.mxu0 0.0
        %510 = vmatpush2.msra.mxu0 0.0
        %511 = vmatprep.subr.mxu0 0.0
        %512 = vmatpush2.msra.mxu0 0.0
        %513 = vmatprep.subr.mxu0 0.0
        %514 = vmatpush2.msra.mxu0 0.0
        %515 = vmatprep.subr.mxu0 0.0
        %516 = vmatpush2.msra.mxu0 0.0
        %517 = vmatprep.subr.mxu0 0.0
        %518 = vmatpush2.msra.mxu0 0.0
        %519 = vmatprep.mubr.f32.mxu0 0.0
        %520 = vmatmul.mubr.f32.gmra.mxu0 %v453
        %v521 = vpop.f32.mrf.mxu0
        %v522 = vadd.f32 0.0, %v521
        %v523 = vpop.f32.mrf.mxu0
        %524 = vdwg.mxu0
        %v525 = vlaneseq
        %v526 = vshrl.u32 %v525, 7
        %v527 = vsub.s32 2, %v526
        %v528 = vrot.slane %v522, %v527
        %v529 = vmul.f32 %v332, %v528
        %v530 = vmul.f32 %v333, %v528
        %531 = vmatprep.subr.mxu0 0.0
        %532 = vmatpush1.msra.mxu0 %v349
        %533 = vmatprep.subr.mxu0 0.0
        %534 = vmatpush1.msra.mxu0 %v348
        %535 = vmatprep.subr.mxu0 0.0
        %536 = vmatpush1.msra.mxu0 %v347
        %537 = vmatprep.subr.mxu0 0.0
        %538 = vmatpush1.msra.mxu0 %v346
        %539 = vmatprep.subr.mxu0 0.0
        %540 = vmatpush1.msra.mxu0 %v345
        %541 = vmatprep.subr.mxu0 0.0
        %542 = vmatpush1.msra.mxu0 %v344
        %543 = vmatprep.subr.mxu0 0.0
        %544 = vmatpush1.msra.mxu0 %v343
        %545 = vmatprep.subr.mxu0 0.0
        %546 = vmatpush1.msra.mxu0 %v342
        %547 = vmatprep.subr.mxu0 0.0
        %548 = vmatpush1.msra.mxu0 %v341
        %549 = vmatprep.subr.mxu0 0.0
        %550 = vmatpush1.msra.mxu0 %v340
        %551 = vmatprep.subr.mxu0 0.0
        %552 = vmatpush1.msra.mxu0 %v339
        %553 = vmatprep.subr.mxu0 0.0
        %554 = vmatpush1.msra.mxu0 %v338
        %555 = vmatprep.subr.mxu0 0.0
        %556 = vmatpush1.msra.mxu0 %v337
        %557 = vmatprep.subr.mxu0 0.0
        %558 = vmatpush1.msra.mxu0 %v336
        %559 = vmatprep.subr.mxu0 0.0
        %560 = vmatpush1.msra.mxu0 %v335
        %561 = vmatprep.subr.mxu0 0.0
        %562 = vmatpush1.msra.mxu0 %v334
        %563 = vmatprep.subr.mxu0 0.0
        %564 = vmatpush2.msra.mxu0 0.0
        %565 = vmatprep.subr.mxu0 0.0
        %566 = vmatpush2.msra.mxu0 0.0
        %567 = vmatprep.subr.mxu0 0.0
        %568 = vmatpush2.msra.mxu0 0.0
        %569 = vmatprep.subr.mxu0 0.0
        %570 = vmatpush2.msra.mxu0 0.0
        %571 = vmatprep.subr.mxu0 0.0
        %572 = vmatpush2.msra.mxu0 0.0
        %573 = vmatprep.subr.mxu0 0.0
        %574 = vmatpush2.msra.mxu0 0.0
        %575 = vmatprep.subr.mxu0 0.0
        %576 = vmatpush2.msra.mxu0 0.0
        %577 = vmatprep.subr.mxu0 0.0
        %578 = vmatpush2.msra.mxu0 0.0
        %579 = vmatprep.subr.mxu0 0.0
        %580 = vmatpush2.msra.mxu0 0.0
        %581 = vmatprep.subr.mxu0 0.0
        %582 = vmatpush2.msra.mxu0 0.0
        %583 = vmatprep.subr.mxu0 0.0
        %584 = vmatpush2.msra.mxu0 0.0
        %585 = vmatprep.subr.mxu0 0.0
        %586 = vmatpush2.msra.mxu0 0.0
        %587 = vmatprep.subr.mxu0 0.0
        %588 = vmatpush2.msra.mxu0 0.0
        %589 = vmatprep.subr.mxu0 0.0
        %590 = vmatpush2.msra.mxu0 0.0
        %591 = vmatprep.subr.mxu0 0.0
        %592 = vmatpush2.msra.mxu0 0.0
        %593 = vmatprep.subr.mxu0 0.0
        %594 = vmatpush2.msra.mxu0 0.0
        %595 = vmatprep.mubr.f32.mxu0 0.0
        %596 = vmatmul.mubr.f32.gmra.mxu0 %v529
        %v597 = vpop.f32.mrf.mxu0
        %v598 = vadd.f32 0.0, %v597
        %v599 = vpop.f32.mrf.mxu0
        %600 = vmatprep.mubr.f32.mxu0 0.0
        %601 = vmatmul.mubr.f32.gmra.mxu0 %v530
        %v602 = vpop.f32.mrf.mxu0
        %v603 = vadd.f32 0.0, %v602
        %v604 = vpop.f32.mrf.mxu0
        %605 = vdwg.mxu0
        %v606 = vlaneseq
        %v607 = vshrl.u32 %v606, 7
        %v608 = vsub.s32 0, %v607
        %v609 = vrot.slane %v522, %v608
        %v610 = vadd.f32 %v609, %v598
        %v611 = vadd.f32 %v609, %v603
        %v612 = vstv %s328
        %v613 = vadd.f32 %v610, %v612
        %v614 = vadd.f32 %v611, %v612
        %vm615 = vcmp.ge.f32.partialorder %v613, 0.0
        %vm616 = vcmp.ge.f32.partialorder %v614, 0.0
        %v617 = vmul.f32 %v613, 0.01
        %v618 = vmul.f32 %v614, 0.01
        %v619 = vsel %vm615, %v613, %v617
        %v620 = vsel %vm616, %v614, %v618
        %v621 = vmul.f32 %v619, %v329
        %v622 = vmul.f32 %v620, %v330
        %v623 = vmax.f32 %v621, %v622
        %v624 = vrot.slane %v623, 4
        %v625 = vmax.f32 %v623, %v624
        %v626 = vrot.slane %v625, 2
        %v627 = vmax.f32 %v625, %v626
        %v628 = vrot.slane %v627, 1
        %v629 = vmax.f32 %v627, %v628
        %v630 = vsub.f32 %v621, %v629
        %v631 = vsub.f32 %v622, %v629
        %v632 = vmul.f32 %v630, 1.442695
        %v633 = vpow.pop %v632
        %v634 = vmul.f32 %v631, 1.442695
        %v635 = vpow.pop %v634
        %v636 = vadd.f32 %v633, %v635
        %v637 = vrot.slane %v636, 4
        %v638 = vadd.f32 %v636, %v637
        %v639 = vrot.slane %v638, 2
        %v640 = vadd.f32 %v638, %v639
        %v641 = vrot.slane %v640, 1
        %v642 = vadd.f32 %v640, %v641
        %v644 = vrot.slane %v522, 2
        %v646 = vadd.f32 %v522, %v644
        %v647 = vadd.f32 %v646, %v612
        %vm648 = vcmp.ge.f32.partialorder %v647, 0.0
        %v649 = vmul.f32 %v647, 0.01
        %v650 = vsel %vm648, %v647, %v649
        %v651 = vmul.f32 %v650, %v331
        %v652 = vsub.f32 %v651, %v629
        %v653 = vmul.f32 %v652, 1.442695
        %v654 = vpow.pop %v653
        %v655 = vrcp.pop %v642
        %v656 = vmul.f32 %v654, %v655
        %v657 = vlaneseq
        %v658 = vshrl.u32 %v657, 7
        %v659 = vsub.s32 0, %v658
        %v660 = vrot.slane %v656, %v659
        %v661 = vmul.f32 %v660, %v442
        %662 = vst [vmem:[%s321] sm:$0xff] %v661
        %v663 = vlaneseq
        %v664 = vshrl.u32 %v663, 7
        %v665 = vsub.s32 3, %v664
        %v666 = vrot.slane %v522, %v665
        %v667 = vmul.f32 %v332, %v666
        %v668 = vmul.f32 %v333, %v666
        %669 = vmatprep.subr.mxu0 0.0
        %670 = vmatpush1.msra.mxu0 %v349
        %671 = vmatprep.subr.mxu0 0.0
        %672 = vmatpush1.msra.mxu0 %v348
        %673 = vmatprep.subr.mxu0 0.0
        %674 = vmatpush1.msra.mxu0 %v347
        %675 = vmatprep.subr.mxu0 0.0
        %676 = vmatpush1.msra.mxu0 %v346
        %677 = vmatprep.subr.mxu0 0.0
        %678 = vmatpush1.msra.mxu0 %v345
        %679 = vmatprep.subr.mxu0 0.0
        %680 = vmatpush1.msra.mxu0 %v344
        %681 = vmatprep.subr.mxu0 0.0
        %682 = vmatpush1.msra.mxu0 %v343
        %683 = vmatprep.subr.mxu0 0.0
        %684 = vmatpush1.msra.mxu0 %v342
        %685 = vmatprep.subr.mxu0 0.0
        %686 = vmatpush1.msra.mxu0 %v341
        %687 = vmatprep.subr.mxu0 0.0
        %688 = vmatpush1.msra.mxu0 %v340
        %689 = vmatprep.subr.mxu0 0.0
        %690 = vmatpush1.msra.mxu0 %v339
        %691 = vmatprep.subr.mxu0 0.0
        %692 = vmatpush1.msra.mxu0 %v338
        %693 = vmatprep.subr.mxu0 0.0
        %694 = vmatpush1.msra.mxu0 %v337
        %695 = vmatprep.subr.mxu0 0.0
        %696 = vmatpush1.msra.mxu0 %v336
        %697 = vmatprep.subr.mxu0 0.0
        %698 = vmatpush1.msra.mxu0 %v335
        %699 = vmatprep.subr.mxu0 0.0
        %700 = vmatpush1.msra.mxu0 %v334
        %701 = vmatprep.subr.mxu0 0.0
        %702 = vmatpush2.msra.mxu0 0.0
        %703 = vmatprep.subr.mxu0 0.0
        %704 = vmatpush2.msra.mxu0 0.0
        %705 = vmatprep.subr.mxu0 0.0
        %706 = vmatpush2.msra.mxu0 0.0
        %707 = vmatprep.subr.mxu0 0.0
        %708 = vmatpush2.msra.mxu0 0.0
        %709 = vmatprep.subr.mxu0 0.0
        %710 = vmatpush2.msra.mxu0 0.0
        %711 = vmatprep.subr.mxu0 0.0
        %712 = vmatpush2.msra.mxu0 0.0
        %713 = vmatprep.subr.mxu0 0.0
        %714 = vmatpush2.msra.mxu0 0.0
        %715 = vmatprep.subr.mxu0 0.0
        %716 = vmatpush2.msra.mxu0 0.0
        %717 = vmatprep.subr.mxu0 0.0
        %718 = vmatpush2.msra.mxu0 0.0
        %719 = vmatprep.subr.mxu0 0.0
        %720 = vmatpush2.msra.mxu0 0.0
        %721 = vmatprep.subr.mxu0 0.0
        %722 = vmatpush2.msra.mxu0 0.0
        %723 = vmatprep.subr.mxu0 0.0
        %724 = vmatpush2.msra.mxu0 0.0
        %725 = vmatprep.subr.mxu0 0.0
        %726 = vmatpush2.msra.mxu0 0.0
        %727 = vmatprep.subr.mxu0 0.0
        %728 = vmatpush2.msra.mxu0 0.0
        %729 = vmatprep.subr.mxu0 0.0
        %730 = vmatpush2.msra.mxu0 0.0
        %731 = vmatprep.subr.mxu0 0.0
        %732 = vmatpush2.msra.mxu0 0.0
        %733 = vmatprep.mubr.f32.mxu0 0.0
        %734 = vmatmul.mubr.f32.gmra.mxu0 %v667
        %v735 = vpop.f32.mrf.mxu0
        %v736 = vadd.f32 0.0, %v735
        %v737 = vpop.f32.mrf.mxu0
        %738 = vmatprep.mubr.f32.mxu0 0.0
        %739 = vmatmul.mubr.f32.gmra.mxu0 %v668
        %v740 = vpop.f32.mrf.mxu0
        %v741 = vadd.f32 0.0, %v740
        %v742 = vpop.f32.mrf.mxu0
        %743 = vdwg.mxu0
        %v744 = vlaneseq
        %v745 = vshrl.u32 %v744, 7
        %v746 = vsub.s32 1, %v745
        %v747 = vrot.slane %v522, %v746
        %v748 = vadd.f32 %v747, %v736
        %v749 = vadd.f32 %v747, %v741
        %v750 = vadd.f32 %v748, %v612
        %v751 = vadd.f32 %v749, %v612
        %vm752 = vcmp.ge.f32.partialorder %v750, 0.0
        %vm753 = vcmp.ge.f32.partialorder %v751, 0.0
        %v754 = vmul.f32 %v750, 0.01
        %v755 = vmul.f32 %v751, 0.01
        %v756 = vsel %vm752, %v750, %v754
        %v757 = vsel %vm753, %v751, %v755
        %v758 = vmul.f32 %v756, %v329
        %v759 = vmul.f32 %v757, %v330
        %v760 = vmax.f32 %v758, %v759
        %v761 = vrot.slane %v760, 4
        %v762 = vmax.f32 %v760, %v761
        %v763 = vrot.slane %v762, 2
        %v764 = vmax.f32 %v762, %v763
        %v765 = vrot.slane %v764, 1
        %v766 = vmax.f32 %v764, %v765
        %v767 = vsub.f32 %v758, %v766
        %v768 = vsub.f32 %v759, %v766
        %v769 = vmul.f32 %v767, 1.442695
        %v770 = vpow.pop %v769
        %v771 = vmul.f32 %v768, 1.442695
        %v772 = vpow.pop %v771
        %v773 = vadd.f32 %v770, %v772
        %v774 = vrot.slane %v773, 4
        %v775 = vadd.f32 %v773, %v774
        %v776 = vrot.slane %v775, 2
        %v777 = vadd.f32 %v775, %v776
        %v778 = vrot.slane %v777, 1
        %v779 = vadd.f32 %v777, %v778
        %v781 = vlaneseq
        %v782 = vshrl.u32 %v781, 7
        %v783 = vsub.s32 0, %v782
        %v784 = vrot.slane %v331, %v783
        %v786 = vmul.f32 %v650, %v784
        %v787 = vsub.f32 %v786, %v766
        %v788 = vmul.f32 %v787, 1.442695
        %v789 = vpow.pop %v788
        %v790 = vrcp.pop %v779
        %v791 = vmul.f32 %v789, %v790
        %v792 = vlaneseq
        %v793 = vshrl.u32 %v792, 7
        %v794 = vsub.s32 1, %v793
        %v795 = vrot.slane %v791, %v794
        %v796 = vmul.f32 %v795, %v447
        %797 = vst [vmem:[%s321 + $0x8] sm:$0xff] %v796
        %s798 = sand.u32 %s224, 1
        %s799 = sand.u32 %s224, 1
        %s800 = smul.addr %s799, 16
        %s801 = scalar_lea.vmem [#allocation3], %s800
        // Predicated region
        $region57: #{gat_block_pallas.1} parent=55 // pred_check
          %p802 = pneg %p234
        $region58: #{gat_block_pallas.1} parent=55 // pred_check_branch
          %804 = sbr.rel (%p802) target = $region60
        $region59: #{gat_block_pallas.1} parent=55 // pred_region
          %s805 = smul.addr %s22, 8
          %s806 = scalar_lea.vmem %s9, %s805
          // Predicated region
          $region61: #{gat_block_pallas.1} parent=59 // pred_check
            _
          $region62: #{gat_block_pallas.1} parent=59 // pred_check_branch
            %808 = sbr.rel (0) target = $region64
          $region63: #{gat_block_pallas.1} parent=59 // pred_region
            // Predicated region
            $region65: #{gat_block_pallas.1} parent=63 // pred_check
              _
            $region66: #{gat_block_pallas.1} parent=63 // pred_check_branch
              %810 = sbr.rel (0) target = $region68
            $region67: #{gat_block_pallas.1} parent=63 // pred_region
              // Predicated region
              $region80: #{gat_block_pallas.1} parent=67 // pred_check
                _
              $region81: #{gat_block_pallas.1} parent=67 // pred_check_branch
                %828 = sbr.rel (0) target = $region83
              $region82: #{gat_block_pallas.1} parent=67 // pred_region
                loop: start=0, step=1, limit=1
                $region84: #{gat_block_pallas.1} parent=82 // loop_pre_header
                  _
                $region85: #{gat_block_pallas.1} parent=82 // loop_header
                  %s830 = sphi 0, %s834
                  %p831 = scmp.ge.s32.totalorder %s830, 1
                  %s835 = sphi %s801, %s801
                  %s836 = sphi %s806, %s806
                $region86: #{gat_block_pallas.1} parent=82 // loop_header_branch
                  %833 = sbr.rel (%p831) target = $region90
                $region87: #{gat_block_pallas.1} parent=82 // loop_body
                  %v837 = vld [vmem:[%s835] sm:$0xff]
                  %838 = vst [vmem:[%s836] sm:$0xff] %v837
                  %v839 = vld [vmem:[%s835 + $0x8] sm:$0xff]
                  %840 = vst [vmem:[%s836 + $0x10] sm:$0xff] %v839
                $region88: #{gat_block_pallas.1} parent=82 // loop_footer
                  %s834 = sadd.s32 1, %s830
                $region89: #{gat_block_pallas.1} parent=82 // loop_footer_branch
                  %829 = sbr.rel target = $region85
                $region90: #{gat_block_pallas.1} parent=82 // loop_exit
                  _
              $region83: #{gat_block_pallas.1} parent=67 // pred_fallthru
                _
              // Predicated region
              $region91: #{gat_block_pallas.1} parent=67 // pred_check
                _
              $region92: #{gat_block_pallas.1} parent=67 // pred_check_branch
                %842 = sbr.rel target = $region94
              $region93: #{gat_block_pallas.1} parent=67 // pred_region
                _
              $region94: #{gat_block_pallas.1} parent=67 // pred_fallthru
                _
            $region68: #{gat_block_pallas.1} parent=63 // pred_fallthru
              _
            // Predicated region
            $region69: #{gat_block_pallas.1} parent=63 // pred_check
              _
            $region70: #{gat_block_pallas.1} parent=63 // pred_check_branch
              %812 = sbr.rel target = $region72
            $region71: #{gat_block_pallas.1} parent=63 // pred_region
              %s814 = ssub.s32 256, 1
              loop: start=0, step=1, limit=1
              $region73: #{gat_block_pallas.1} parent=71 // loop_pre_header
                _
              $region74: #{gat_block_pallas.1} parent=71 // loop_header
                %s816 = sphi 0, %s820
                %p817 = scmp.ge.s32.totalorder %s816, 1
                %s821 = sphi %s801, %s801
                %s822 = sphi %s806, %s806
              $region75: #{gat_block_pallas.1} parent=71 // loop_header_branch
                %819 = sbr.rel (%p817) target = $region79
              $region76: #{gat_block_pallas.1} parent=71 // loop_body
                %v823 = vld [vmem:[%s821] sm:%s814]
                %824 = vst [vmem:[%s822] sm:%s814] %v823
                %v825 = vld [vmem:[%s821 + $0x8] sm:%s814]
                %826 = vst [vmem:[%s822 + $0x10] sm:%s814] %v825
              $region77: #{gat_block_pallas.1} parent=71 // loop_footer
                %s820 = sadd.s32 1, %s816
              $region78: #{gat_block_pallas.1} parent=71 // loop_footer_branch
                %815 = sbr.rel target = $region74
              $region79: #{gat_block_pallas.1} parent=71 // loop_exit
                _
            $region72: #{gat_block_pallas.1} parent=63 // pred_fallthru
              _
          $region64: #{gat_block_pallas.1} parent=59 // pred_fallthru
            _
          %843 = vnop
        $region60: #{gat_block_pallas.1} parent=55 // pred_fallthru
          _
      $region56: #{gat_block_pallas.1} parent=5 // pred_fallthru
        _
      %p844 = scmp.le.s32.totalorder 2, %s17
      // Predicated region
      $region95: #{gat_block_pallas.1} parent=5 // pred_check
        %p845 = pneg %p844
      $region96: #{gat_block_pallas.1} parent=5 // pred_check_branch
        %847 = sbr.rel (%p845) target = $region98
      $region97: #{gat_block_pallas.1} parent=5 // pred_region
        %s848 = ssub.s32 %s17, 2
        // Predicated region
        $region99: #{gat_block_pallas.1} parent=97 // pred_check
          %p849 = pneg %p240
        $region100: #{gat_block_pallas.1} parent=97 // pred_check_branch
          %851 = sbr.rel (%p849) target = $region102
        $region101: #{gat_block_pallas.1} parent=97 // pred_region
          %s852 = sand.u32 %s225, 1
          %s853 = sand.u32 %s225, 1
          %s854 = smul.addr %s853, 16
          %s855 = scalar_lea.vmem [#allocation3], %s854
        $region102: #{gat_block_pallas.1} parent=97 // pred_fallthru
          _
      $region98: #{gat_block_pallas.1} parent=5 // pred_fallthru
        _
    $region6: #{gat_block_pallas.1} parent=1 // loop_footer
      %s21 = sadd.s32 1, %s17
    $region7: #{gat_block_pallas.1} parent=1 // loop_footer_branch
      %16 = sbr.rel target = $region3
    $region8: #{gat_block_pallas.1} parent=1 // loop_exit
      _

</llo_original>
